<compile_context>
chip_gen: v7x
topology: tpu7x:2x2x1
jax: 0.10.0
libtpu: 0.0.40
codegen_flags: <defaults>
</compile_context>

<pallas_src>
import functools

import jax
import jax.numpy as jnp
import numpy as np
from jax.experimental import pallas as pl
from jax.experimental.pallas import tpu as pltpu

_LANE = 128


def _round_up(v, m):
    return (v + m - 1) // m * m


def _pad_to(a, shape):
    pads = [(0, t - s) for s, t in zip(a.shape, shape)]
    return jnp.pad(a, pads)


# ---------------------------------------------------------------------------
# Kernel
# ---------------------------------------------------------------------------
def _make_decoder_kernel(num_layers, h_real, h_pad, out_real, use_bf16):
    n_pad_cols = h_pad - h_real
    inv_h = 1.0 / float(h_real)

    def _mm(a, b):
        if use_bf16:
            return jnp.dot(a.astype(jnp.bfloat16), b.astype(jnp.bfloat16),
                           preferred_element_type=jnp.float32)
        return jnp.dot(a, b, preferred_element_type=jnp.float32)

    def _small_contract(a, w):
        # a: (TB, K) with tiny K, w: (K, H_pad).  Outer-product accumulation on
        # the VPU — avoids masked tiny-K MXU tiles for the 2/1-wide z/x inputs.
        acc = a[:, 0:1] * w[0:1, :]
        for k in range(1, a.shape[1]):
            acc = acc + a[:, k:k + 1] * w[k:k + 1, :]
        return acc

    def _first_contract(a, w):
        if a.shape[1] <= 8:
            return _small_contract(a, w)
        return _mm(a, w)

    def kernel(*refs):
        z_ref, x_ref, w0z_ref, w0x_ref = refs[:4]
        hidden_w_refs = refs[4:4 + num_layers - 1]
        slab_ref = refs[4 + num_layers - 1]   # (3*L, H_pad): b / gamma / beta rows
        wf_ref = refs[5 + num_layers - 1]     # fused head weight (H_pad, OUT2_pad)
        bf_ref = refs[6 + num_layers - 1]     # fused head bias   (1, OUT2_pad)
        out_ref = refs[7 + num_layers - 1]    # (TB, OUT2_pad)

        # First layer: torch.cat([z, x], 1) @ W0  ==  z @ W0_z + x @ W0_x
        h = (_first_contract(z_ref[...].astype(jnp.float32), w0z_ref[...]) +
             _first_contract(x_ref[...].astype(jnp.float32), w0x_ref[...]))

        for layer in range(num_layers):
            if layer > 0:
                h = _mm(h, hidden_w_refs[layer - 1][...])
            row = 3 * layer
            b = slab_ref[row:row + 1, :]        # (1, H_pad)
            gamma = slab_ref[row + 1:row + 2, :]
            beta = slab_ref[row + 2:row + 3, :]
            h = h + b
            # LayerNorm over the REAL hidden features only.  Padded columns of
            # h are exactly zero (zero-padded weights/bias), so the sum over
            # the padded width equals the real sum; the variance gets a
            # correction for the n_pad_cols columns that contribute (-mu)^2.
            mu = jnp.sum(h, axis=-1, keepdims=True) * inv_h
            d = h - mu
            ssq = jnp.sum(d * d, axis=-1, keepdims=True)
            if n_pad_cols:
                ssq = ssq - float(n_pad_cols) * mu * mu
            var = ssq * inv_h
            h = d * jax.lax.rsqrt(var + 1e-5) * gamma + beta
            # Dropout(p=0) is the identity (module default); ReLU:
            h = jnp.maximum(h, 0.0)
            # TODO(synk): training-mode Dropout (p>0) would need pltpu.prng_*.

        # Fused heads: one lane-dense matmul + store.  Columns [0, out) are the
        # mean head, [out, 2*out) the log-std head (exp applied in place, EUP
        # slot is free next to the VPU select).
        f = _mm(h, wf_ref[...]) + bf_ref[...]
        col = jax.lax.broadcasted_iota(jnp.int32, f.shape, 1)
        is_logstd = (col >= out_real) & (col < 2 * out_real)
        out_ref[...] = jnp.where(is_logstd, jnp.exp(f), f)

    return kernel


# ---------------------------------------------------------------------------
# Wrapper
# ---------------------------------------------------------------------------
@functools.partial(
    jax.jit, static_argnames=("num_layers", "hidden_real", "out_real", "use_bf16"))
def decoder_forward(z, x, packed, num_layers, hidden_real, out_real,
                    use_bf16=False):
    w0z, w0x = packed[0], packed[1]
    hidden_ws = packed[2:2 + num_layers - 1]
    slab, wf, bf = packed[-3], packed[-2], packed[-1]

    batch = z.shape[0]
    z_dim, x_dim = z.shape[1], x.shape[1]
    out2_pad = wf.shape[1]

    # Batch tiling: pad batch to a multiple of 8 sublanes, pick the largest
    # tile (<= 256, so large batches still give >=2 grid steps for the v7x
    # megacore) that divides it; weights are fetched once and stay resident.
    b8 = _round_up(batch, 8)
    tb = next(t for t in (256, 128, 64, 32, 16, 8) if b8 % t == 0)
    if b8 != batch:
        z = jnp.pad(z, ((0, b8 - batch), (0, 0)))
        x = jnp.pad(x, ((0, b8 - batch), (0, 0)))
    grid = (b8 // tb,)

    in_specs = [
        pl.BlockSpec((tb, z_dim), lambda i: (i, 0)),
        pl.BlockSpec((tb, x_dim), lambda i: (i, 0)),
        pl.BlockSpec(w0z.shape, lambda i: (0, 0)),
        pl.BlockSpec(w0x.shape, lambda i: (0, 0)),
    ]
    for w in hidden_ws:
        in_specs.append(pl.BlockSpec(w.shape, lambda i: (0, 0)))
    in_specs += [
        pl.BlockSpec(slab.shape, lambda i: (0, 0)),
        pl.BlockSpec(wf.shape, lambda i: (0, 0)),
        pl.BlockSpec(bf.shape, lambda i: (0, 0)),
    ]
    out_specs = pl.BlockSpec((tb, out2_pad), lambda i: (i, 0))

    kernel = _make_decoder_kernel(num_layers, hidden_real, w0z.shape[1],
                                  out_real, use_bf16)

    fused = pl.pallas_call(
        kernel,
        out_shape=jax.ShapeDtypeStruct((b8, out2_pad), jnp.float32),
        grid_spec=pltpu.PrefetchScalarGridSpec(
            num_scalar_prefetch=0,
            grid=grid,
            in_specs=in_specs,
            out_specs=out_specs,
        ),
        compiler_params=pltpu.CompilerParams(
            dimension_semantics=("parallel",),   # 2x on v7x megacore; no-op v5e/v6e
            vmem_limit_bytes=32 * 1024 * 1024,   # fits v5e scoped & v7x 64 MiB phys
        ),
    )(z, x, w0z, w0x, *hidden_ws, slab, wf, bf)

    m1 = fused[:batch, :out_real]
    s1 = fused[:batch, out_real:2 * out_real]
    return m1, s1


# ---------------------------------------------------------------------------
# Parameters (synthetic, shapes match the torch module) + host-side packing
# ---------------------------------------------------------------------------
def init_decoder_params(key, out_dims, hidden_dims, latent_dims, layers):
    params = {"layers": []}
    for i in range(layers):
        in_d = latent_dims if i == 0 else hidden_dims
        key, k1, k2, k3, k4 = jax.random.split(key, 5)
        w = jax.random.normal(k1, (in_d, hidden_dims), jnp.float32) * 0.05
        b = jax.random.normal(k2, (1, hidden_dims), jnp.float32) * 0.01
        gamma = 1.0 + 0.1 * jax.random.normal(k3, (1, hidden_dims), jnp.float32)
        beta = 0.1 * jax.random.normal(k4, (1, hidden_dims), jnp.float32)
        params["layers"].append((w, b, gamma, beta))
    key, k1, k2, k3, k4 = jax.random.split(key, 5)
    params["wm"] = jax.random.normal(k1, (hidden_dims, out_dims), jnp.float32) * 0.05
    params["bm"] = jax.random.normal(k2, (1, out_dims), jnp.float32) * 0.01
    params["wls"] = jax.random.normal(k3, (hidden_dims, out_dims), jnp.float32) * 0.05
    params["bls"] = jax.random.normal(k4, (1, out_dims), jnp.float32) * 0.01
    return params


def pack_params(params, z_dim, x_dim):
    """Zero-pad to lane multiples, split W0 by [z|x], fuse the two heads and
    stack per-layer bias/gamma/beta into one slab."""
    layers = params["layers"]
    hidden = layers[0][0].shape[1]
    out = params["wm"].shape[1]
    h_pad = _round_up(hidden, _LANE)
    out2_pad = _round_up(2 * out, _LANE)

    w0 = layers[0][0]
    assert w0.shape[0] == z_dim + x_dim, "W0 rows must equal z_dim + x_dim"
    w0z = _pad_to(w0[:z_dim], (z_dim, h_pad))
    w0x = _pad_to(w0[z_dim:z_dim + x_dim], (x_dim, h_pad))
    hidden_ws = tuple(_pad_to(w, (h_pad, h_pad)) for (w, _, _, _) in layers[1:])

    slab_rows = []
    for (_, b, g, be) in layers:
        slab_rows += [_pad_to(b, (1, h_pad)),
                      _pad_to(g, (1, h_pad)),
                      _pad_to(be, (1, h_pad))]
    slab = jnp.concatenate(slab_rows, axis=0)                       # (3L, H_pad)

    wf = _pad_to(jnp.concatenate([params["wm"], params["wls"]], axis=1),
                 (h_pad, out2_pad))
    bf = _pad_to(jnp.concatenate([params["bm"], params["bls"]], axis=1),
                 (1, out2_pad))
    return (w0z, w0x) + hidden_ws + (slab, wf, bf)


# ---------------------------------------------------------------------------
# Pure-JAX reference (matches the torch forward)
# ---------------------------------------------------------------------------
def decoder_forward_ref(z, x, params):
    hp = jax.lax.Precision.HIGHEST
    h = jnp.concatenate([z, x], axis=1)
    for (w, b, g, be) in params["layers"]:
        h = jnp.dot(h, w, precision=hp) + b
        mu = jnp.mean(h, axis=-1, keepdims=True)
        var = jnp.mean((h - mu) ** 2, axis=-1, keepdims=True)
        h = (h - mu) / jnp.sqrt(var + 1e-5) * g + be
        h = jnp.maximum(h, 0.0)
    m1 = jnp.dot(h, params["wm"], precision=hp) + params["bm"]
    s1 = jnp.exp(jnp.dot(h, params["wls"], precision=hp) + params["bls"])
    return m1, s1


# ---------------------------------------------------------------------------
if __name__ == "__main__":
    hidden_dims = 32
    out_dims = 16
    z_dim, x_dim = 2, 1
    latent_dims = z_dim + x_dim   # width of cat([z, x], 1)

    # (batch, layers): single tile, padded batch, multi-tile grid, deeper stack.
    configs = [(8, 1), (13, 1), (512, 2), (64, 3)]

    key = jax.random.PRNGKey(0)
    for batch, layers in configs:
        key, kz, kx, kp = jax.random.split(key, 4)
        z = jax.random.normal(kz, (batch, z_dim), jnp.float32)
        x = jax.random.normal(kx, (batch, x_dim), jnp.float32)

        params = init_decoder_params(kp, out_dims, hidden_dims, latent_dims, layers)
        packed = pack_params(params, z_dim, x_dim)

        m1, s1 = decoder_forward(z, x, packed, num_layers=layers,
                                 hidden_real=hidden_dims, out_real=out_dims)
        m1 = jax.block_until_ready(m1)
        s1 = jax.block_until_ready(s1)

        m_ref, s_ref = decoder_forward_ref(z, x, params)
        np.testing.assert_allclose(np.asarray(m1), np.asarray(m_ref),
                                   rtol=5e-4, atol=5e-4)
        np.testing.assert_allclose(np.asarray(s1), np.asarray(s_ref),
                                   rtol=5e-4, atol=5e-4)

    print("KERNEL_OK")
</pallas_src>

<mosaic_0001>
module attributes {stable_mosaic.version = 11 : i64} {
  func.func @kernel(%arg0: i32, %arg1: memref<8x2xf32, #tpu.memory_space<vmem>>, %arg2: memref<8x1xf32, #tpu.memory_space<vmem>>, %arg3: memref<2x128xf32, #tpu.memory_space<vmem>>, %arg4: memref<1x128xf32, #tpu.memory_space<vmem>>, %arg5: memref<3x128xf32, #tpu.memory_space<vmem>>, %arg6: memref<128x128xf32, #tpu.memory_space<vmem>>, %arg7: memref<1x128xf32, #tpu.memory_space<vmem>>, %arg8: memref<8x128xf32, #tpu.memory_space<vmem>>) attributes {dimension_semantics = [#tpu.dimension_semantics<parallel>], iteration_bounds = array<i64: 1>, scalar_prefetch = 0 : i64, scratch_operands = 0 : i64, tpu.core_type = #tpu.core_type<tc>, window_params = [{transform_indices = @transform_0, window_bounds = array<i64: 8, 2>}, {transform_indices = @transform_1, window_bounds = array<i64: 8, 1>}, {pipeline_mode = #tpu.pipeline_mode<synchronous>, transform_indices = @transform_2, window_bounds = array<i64: 2, 128>}, {pipeline_mode = #tpu.pipeline_mode<synchronous>, transform_indices = @transform_3, window_bounds = array<i64: 1, 128>}, {pipeline_mode = #tpu.pipeline_mode<synchronous>, transform_indices = @transform_4, window_bounds = array<i64: 3, 128>}, {pipeline_mode = #tpu.pipeline_mode<synchronous>, transform_indices = @transform_5, window_bounds = array<i64: 128, 128>}, {pipeline_mode = #tpu.pipeline_mode<synchronous>, transform_indices = @transform_6, window_bounds = array<i64: 1, 128>}, {transform_indices = @transform_7, window_bounds = array<i64: 8, 128>}]} {
    %c0 = arith.constant 0 : index
    %c0_0 = arith.constant 0 : index
    %0 = vector.load %arg1[%c0, %c0_0] : memref<8x2xf32, #tpu.memory_space<vmem>>, vector<8x2xf32>
    %c0_1 = arith.constant 0 : index
    %c0_2 = arith.constant 0 : index
    %1 = vector.load %arg3[%c0_1, %c0_2] : memref<2x128xf32, #tpu.memory_space<vmem>>, vector<2x128xf32>
    %2 = vector.extract_strided_slice %0 {offsets = [0, 0], sizes = [8, 1], strides = [1, 1]} : vector<8x2xf32> to vector<8x1xf32>
    %3 = vector.extract_strided_slice %1 {offsets = [0, 0], sizes = [1, 128], strides = [1, 1]} : vector<2x128xf32> to vector<1x128xf32>
    %4 = vector.broadcast %2 : vector<8x1xf32> to vector<8x128xf32>
    %5 = vector.broadcast %3 : vector<1x128xf32> to vector<8x128xf32>
    %6 = arith.mulf %4, %5 : vector<8x128xf32>
    %7 = vector.extract_strided_slice %0 {offsets = [0, 1], sizes = [8, 1], strides = [1, 1]} : vector<8x2xf32> to vector<8x1xf32>
    %8 = vector.extract_strided_slice %1 {offsets = [1, 0], sizes = [1, 128], strides = [1, 1]} : vector<2x128xf32> to vector<1x128xf32>
    %9 = vector.broadcast %7 : vector<8x1xf32> to vector<8x128xf32>
    %10 = vector.broadcast %8 : vector<1x128xf32> to vector<8x128xf32>
    %11 = arith.mulf %9, %10 : vector<8x128xf32>
    %12 = arith.addf %6, %11 : vector<8x128xf32>
    %c0_3 = arith.constant 0 : index
    %c0_4 = arith.constant 0 : index
    %13 = vector.load %arg2[%c0_3, %c0_4] : memref<8x1xf32, #tpu.memory_space<vmem>>, vector<8x1xf32>
    %c0_5 = arith.constant 0 : index
    %c0_6 = arith.constant 0 : index
    %14 = vector.load %arg4[%c0_5, %c0_6] : memref<1x128xf32, #tpu.memory_space<vmem>>, vector<1x128xf32>
    %15 = vector.broadcast %13 : vector<8x1xf32> to vector<8x128xf32>
    %16 = vector.broadcast %14 : vector<1x128xf32> to vector<8x128xf32>
    %17 = arith.mulf %15, %16 : vector<8x128xf32>
    %18 = arith.addf %12, %17 : vector<8x128xf32>
    %c0_7 = arith.constant 0 : index
    %c0_8 = arith.constant 0 : index
    %19 = vector.load %arg5[%c0_7, %c0_8] : memref<3x128xf32, #tpu.memory_space<vmem>>, vector<1x128xf32>
    %c1 = arith.constant 1 : index
    %c0_9 = arith.constant 0 : index
    %20 = vector.load %arg5[%c1, %c0_9] : memref<3x128xf32, #tpu.memory_space<vmem>>, vector<1x128xf32>
    %c2 = arith.constant 2 : index
    %c0_10 = arith.constant 0 : index
    %21 = vector.load %arg5[%c2, %c0_10] : memref<3x128xf32, #tpu.memory_space<vmem>>, vector<1x128xf32>
    %22 = vector.broadcast %19 : vector<1x128xf32> to vector<8x128xf32>
    %23 = arith.addf %18, %22 : vector<8x128xf32>
    %cst = arith.constant dense<0.000000e+00> : vector<8xf32>
    %24 = vector.multi_reduction <add>, %23, %cst [1] : vector<8x128xf32> to vector<8xf32>
    %25 = vector.shape_cast %24 : vector<8xf32> to vector<8x1xf32>
    %cst_11 = arith.constant 3.125000e-02 : f32
    %26 = vector.broadcast %cst_11 : f32 to vector<8x1xf32>
    %27 = arith.mulf %25, %26 : vector<8x1xf32>
    %28 = vector.broadcast %27 : vector<8x1xf32> to vector<8x128xf32>
    %29 = arith.subf %23, %28 : vector<8x128xf32>
    %30 = arith.mulf %29, %29 : vector<8x128xf32>
    %cst_12 = arith.constant dense<0.000000e+00> : vector<8xf32>
    %31 = vector.multi_reduction <add>, %30, %cst_12 [1] : vector<8x128xf32> to vector<8xf32>
    %32 = vector.shape_cast %31 : vector<8xf32> to vector<8x1xf32>
    %cst_13 = arith.constant 9.600000e+01 : f32
    %33 = vector.broadcast %cst_13 : f32 to vector<8x1xf32>
    %34 = arith.mulf %33, %27 : vector<8x1xf32>
    %35 = arith.mulf %34, %27 : vector<8x1xf32>
    %36 = arith.subf %32, %35 : vector<8x1xf32>
    %cst_14 = arith.constant 3.125000e-02 : f32
    %37 = vector.broadcast %cst_14 : f32 to vector<8x1xf32>
    %38 = arith.mulf %36, %37 : vector<8x1xf32>
    %cst_15 = arith.constant 9.99999974E-6 : f32
    %39 = vector.broadcast %cst_15 : f32 to vector<8x1xf32>
    %40 = arith.addf %38, %39 : vector<8x1xf32>
    %41 = math.rsqrt %40 : vector<8x1xf32>
    %42 = vector.broadcast %41 : vector<8x1xf32> to vector<8x128xf32>
    %43 = arith.mulf %29, %42 : vector<8x128xf32>
    %44 = vector.broadcast %20 : vector<1x128xf32> to vector<8x128xf32>
    %45 = arith.mulf %43, %44 : vector<8x128xf32>
    %46 = vector.broadcast %21 : vector<1x128xf32> to vector<8x128xf32>
    %47 = arith.addf %45, %46 : vector<8x128xf32>
    %cst_16 = arith.constant 0.000000e+00 : f32
    %48 = vector.broadcast %cst_16 : f32 to vector<8x128xf32>
    %49 = arith.maximumf %47, %48 : vector<8x128xf32>
    %c0_17 = arith.constant 0 : index
    %c0_18 = arith.constant 0 : index
    %50 = vector.load %arg6[%c0_17, %c0_18] : memref<128x128xf32, #tpu.memory_space<vmem>>, vector<128x128xf32>
    %cst_19 = arith.constant dense<0.000000e+00> : vector<8x128xf32>
    %51 = tpu.matmul %49, %50, %cst_19 {dimension_numbers = #tpu.dot_dimension_numbers<[1], [0], [0], [1], [0, 0, 1, 1], [], []>} : vector<8x128xf32>, vector<128x128xf32>, vector<8x128xf32> -> vector<8x128xf32>
    %c0_20 = arith.constant 0 : index
    %c0_21 = arith.constant 0 : index
    %52 = vector.load %arg7[%c0_20, %c0_21] : memref<1x128xf32, #tpu.memory_space<vmem>>, vector<1x128xf32>
    %53 = vector.broadcast %52 : vector<1x128xf32> to vector<8x128xf32>
    %54 = arith.addf %51, %53 : vector<8x128xf32>
    %55 = tpu.iota {dimensions = array<i32: 1>} : vector<8x128xi32>
    %c16_i32 = arith.constant 16 : i32
    %56 = vector.broadcast %c16_i32 : i32 to vector<8x128xi32>
    %57 = arith.cmpi sge, %55, %56 : vector<8x128xi32>
    %c32_i32 = arith.constant 32 : i32
    %58 = vector.broadcast %c32_i32 : i32 to vector<8x128xi32>
    %59 = arith.cmpi slt, %55, %58 : vector<8x128xi32>
    %60 = arith.andi %57, %59 : vector<8x128xi1>
    %61 = math.exp %54 : vector<8x128xf32>
    %62 = arith.select %60, %61, %54 : vector<8x128xi1>, vector<8x128xf32>
    %c0_22 = arith.constant 0 : index
    %c0_23 = arith.constant 0 : index
    %63 = vector.load %arg8[%c0_22, %c0_23] : memref<8x128xf32, #tpu.memory_space<vmem>>, vector<8x128xf32>
    tpu.vector_store %arg8[%c0_22, %c0_23], %62 {strides = array<i32>} : memref<8x128xf32, #tpu.memory_space<vmem>>, vector<8x128xf32>,
    return
  }
  func.func @transform_0(%arg0: i32) -> (i32, i32) {
    %c0_i32 = arith.constant 0 : i32
    %c0_i32_0 = arith.constant 0 : i32
    return %arg0, %c0_i32 : i32, i32
  }
  func.func @transform_1(%arg0: i32) -> (i32, i32) {
    %c0_i32 = arith.constant 0 : i32
    %c0_i32_0 = arith.constant 0 : i32
    return %arg0, %c0_i32 : i32, i32
  }
  func.func @transform_2(%arg0: i32) -> (i32, i32) {
    %c0_i32 = arith.constant 0 : i32
    %c0_i32_0 = arith.constant 0 : i32
    %c0_i32_1 = arith.constant 0 : i32
    return %c0_i32, %c0_i32_0 : i32, i32
  }
  func.func @transform_3(%arg0: i32) -> (i32, i32) {
    %c0_i32 = arith.constant 0 : i32
    %c0_i32_0 = arith.constant 0 : i32
    %c0_i32_1 = arith.constant 0 : i32
    return %c0_i32, %c0_i32_0 : i32, i32
  }
  func.func @transform_4(%arg0: i32) -> (i32, i32) {
    %c0_i32 = arith.constant 0 : i32
    %c0_i32_0 = arith.constant 0 : i32
    %c0_i32_1 = arith.constant 0 : i32
    return %c0_i32, %c0_i32_0 : i32, i32
  }
  func.func @transform_5(%arg0: i32) -> (i32, i32) {
    %c0_i32 = arith.constant 0 : i32
    %c0_i32_0 = arith.constant 0 : i32
    %c0_i32_1 = arith.constant 0 : i32
    return %c0_i32, %c0_i32_0 : i32, i32
  }
  func.func @transform_6(%arg0: i32) -> (i32, i32) {
    %c0_i32 = arith.constant 0 : i32
    %c0_i32_0 = arith.constant 0 : i32
    %c0_i32_1 = arith.constant 0 : i32
    return %c0_i32, %c0_i32_0 : i32, i32
  }
  func.func @transform_7(%arg0: i32) -> (i32, i32) {
    %c0_i32 = arith.constant 0 : i32
    %c0_i32_0 = arith.constant 0 : i32
    return %arg0, %c0_i32 : i32, i32
  }
}

</mosaic_0001>

<llo_original>
// kernel: decoder_forward.1
$region0: #{decoder_forward.1}
  #allocation0 [shape = 'u32[]', space=smem, size = 0x4, offset = 0x4, fixed_abs, tag = 'smem constant byte address 0x4 - core index']
  #allocation1 [shape = 'u32[144,128]{1,0:T(1,128)}', space=vmem, size = 0x12000, scoped, tag = 'internal scratch']
  %s0 = inlined_call_operand.vmem [shape: f32[8,2], index: 0, kind: input, shape index: {}]
  %s1 = inlined_call_operand.vmem [shape: f32[8,1], index: 1, kind: input, shape index: {}]
  %s2 = inlined_call_operand.vmem [shape: f32[2,128], index: 2, kind: input, shape index: {}]
  %s3 = inlined_call_operand.vmem [shape: f32[1,128], index: 3, kind: input, shape index: {}]
  %s4 = inlined_call_operand.vmem [shape: f32[3,128], index: 4, kind: input, shape index: {}]
  %s5 = inlined_call_operand.hbm [shape: f32[128,128], index: 5, kind: input, shape index: {}]
  %s6 = inlined_call_operand.vmem [shape: f32[1,128], index: 6, kind: input, shape index: {}]
  %s7 = inlined_call_operand.vmem [shape: f32[8,128], index: 7, kind: output, shape index: {}]
  %s8 = sld [smem:[#allocation0]]
  $region42: #{decoder_forward.1} parent=0
    _
  %s10 = ssub.s32 1, %s8
  %s11 = scalar_select 0, %s10, %s8
  $region1: #{decoder_forward.1} parent=0
    #allocation2 [shape = 'u8[65536]{0}', space=vmem, size = 0x10000, scoped, tag = 'input window, operand 5, single buffered']
    #allocation3 [shape = 's32[1]{0}', space=sflag, size = 0x4, scoped, tag = 'scoped memory for decoder_forward.1']
    %12 = vsyncpa [#allocation3], 0
    // Predicated region
    $region2: #{decoder_forward.1} parent=1 // pred_check
      _
    $region3: #{decoder_forward.1} parent=1 // pred_check_branch
      %14 = sbr.rel (0) target = $region5
    $region4: #{decoder_forward.1} parent=1 // pred_region
      _
    $region5: #{decoder_forward.1} parent=1 // pred_fallthru
      _
    // Predicated region
    $region6: #{decoder_forward.1} parent=1 // pred_check
      _
    $region7: #{decoder_forward.1} parent=1 // pred_check_branch
      %16 = sbr.rel (0) target = $region9
    $region8: #{decoder_forward.1} parent=1 // pred_region
      _
    $region9: #{decoder_forward.1} parent=1 // pred_fallthru
      _
    // Predicated region
    $region10: #{decoder_forward.1} parent=1 // pred_check
      _
    $region11: #{decoder_forward.1} parent=1 // pred_check_branch
      %18 = sbr.rel (0) target = $region13
    $region12: #{decoder_forward.1} parent=1 // pred_region
      _
    $region13: #{decoder_forward.1} parent=1 // pred_fallthru
      _
    // Predicated region
    $region14: #{decoder_forward.1} parent=1 // pred_check
      _
    $region15: #{decoder_forward.1} parent=1 // pred_check_branch
      %20 = sbr.rel (0) target = $region17
    $region16: #{decoder_forward.1} parent=1 // pred_region
      _
    $region17: #{decoder_forward.1} parent=1 // pred_fallthru
      _
    // Predicated region
    $region18: #{decoder_forward.1} parent=1 // pred_check
      _
    $region19: #{decoder_forward.1} parent=1 // pred_check_branch
      %22 = sbr.rel (0) target = $region21
    $region20: #{decoder_forward.1} parent=1 // pred_region
      _
    $region21: #{decoder_forward.1} parent=1 // pred_fallthru
      _
    // Predicated region
    $region22: #{decoder_forward.1} parent=1 // pred_check
      _
    $region23: #{decoder_forward.1} parent=1 // pred_check_branch
      %24 = sbr.rel (0) target = $region25
    $region24: #{decoder_forward.1} parent=1 // pred_region
      %s26 = ssub.s32 2048, 2048
      %27 = vsyncadd [#allocation3], %s26
      %s28 = sshll.u32 [#allocation2], 4
      %s29 = int_to_ptr.vmem [resolvable:$true] %s28
      %34 = dma.hbm_to_vmem [thread:$0]  %s5, 2048, %s29, [#allocation3], 128, 128, 8
    $region25: #{decoder_forward.1} parent=1 // pred_fallthru
      _
    // Predicated region
    $region26: #{decoder_forward.1} parent=1 // pred_check
      _
    $region27: #{decoder_forward.1} parent=1 // pred_check_branch
      %36 = sbr.rel (0) target = $region29
    $region28: #{decoder_forward.1} parent=1 // pred_region
      _
    $region29: #{decoder_forward.1} parent=1 // pred_fallthru
      _
    // Predicated region
    $region30: #{decoder_forward.1} parent=1 // pred_check
      _
    $region31: #{decoder_forward.1} parent=1 // pred_check_branch
      %38 = sbr.rel (0) target = $region33
    $region32: #{decoder_forward.1} parent=1 // pred_region
      %39 = dma.done [#allocation3], 2048
    $region33: #{decoder_forward.1} parent=1 // pred_fallthru
      _
    %v40 = vld [vmem:[%s0] sm:$0xff]
    %v41 = vld [vmem:[%s2] sm:$0x3]
    %43 = vset.pattern.permute.xlu0 0
    %44 = vperm.xlu0 %43, %v40
    %v45 = vpop.permute.xlu0 %44
    %v47 = vlaneseq
    %v48 = vshrl.u32 %v47, 7
    %v49 = vsub.s32 0, %v48
    %v50 = vrot.slane %v41, %v49
    %v51 = vmul.f32 %v45, %v50
    %52 = vset.pattern.permute.xlu0 1
    %53 = vperm.xlu0 %52, %v40
    %v54 = vpop.permute.xlu0 %53
    %v56 = vlaneseq
    %v57 = vshrl.u32 %v56, 7
    %v58 = vsub.s32 1, %v57
    %v59 = vrot.slane %v41, %v58
    %v60 = vmul.f32 %v54, %v59
    %v61 = vadd.f32 %v51, %v60
    %v62 = vld [vmem:[%s1] sm:$0xff]
    %v63 = vld [vmem:[%s3] sm:$0x1]
    %65 = vset.pattern.permute.xlu0 0
    %66 = vperm.xlu0 %65, %v62
    %v67 = vpop.permute.xlu0 %66
    %v70 = vlaneseq
    %v71 = vshrl.u32 %v70, 7
    %v72 = vsub.s32 0, %v71
    %v73 = vrot.slane %v63, %v72
    %v75 = vmul.f32 %v67, %v73
    %v76 = vadd.f32 %v61, %v75
    %v77 = vld [vmem:[%s4] sm:$0x1]
    %v78 = vld [vmem:[%s4 + $0x1] sm:$0x1]
    %v79 = vld [vmem:[%s4 + $0x2] sm:$0x1]
    %v80 = vlaneseq
    %v81 = vshrl.u32 %v80, 7
    %v82 = vsub.s32 0, %v81
    %v83 = vrot.slane %v77, %v82
    %v84 = vadd.f32 %v76, %v83
    %85 = vadd.xlane.f32.xlu0 %v84
    %v86 = vpop.xlane.xlu0 %85
    %v87 = vmul.f32 %v86, 0.03125
    %v88 = vsub.f32 %v84, %v87
    %v89 = vmul.f32 %v88, %v88
    %90 = vadd.xlane.f32.xlu0 %v89
    %v91 = vpop.xlane.xlu0 %90
    %v92 = vmul.f32 %v87, 96.0
    %v93 = vmul.f32 %v92, %v87
    %v94 = vsub.f32 %v91, %v93
    %v95 = vmul.f32 %v94, 0.03125
    %v96 = vadd.f32 %v95, 1e-05
    %v97 = vrsqrt.pop %v96
    %v98 = vmul.f32 %v88, %v97
    %v99 = vlaneseq
    %v100 = vshrl.u32 %v99, 7
    %v101 = vsub.s32 0, %v100
    %v102 = vrot.slane %v78, %v101
    %v103 = vmul.f32 %v98, %v102
    %v104 = vlaneseq
    %v105 = vshrl.u32 %v104, 7
    %v106 = vsub.s32 0, %v105
    %v107 = vrot.slane %v79, %v106
    %v108 = vadd.f32 %v103, %v107
    %v109 = vmax.f32 %v108, 0.0
    %v110 = vld [vmem:[#allocation2] sm:$0xff]
    %v111 = vld [vmem:[#allocation2 + $0x8] sm:$0xff]
    %v112 = vld [vmem:[#allocation2 + $0x10] sm:$0xff]
    %v113 = vld [vmem:[#allocation2 + $0x18] sm:$0xff]
    %v114 = vld [vmem:[#allocation2 + $0x20] sm:$0xff]
    %v115 = vld [vmem:[#allocation2 + $0x28] sm:$0xff]
    %v116 = vld [vmem:[#allocation2 + $0x30] sm:$0xff]
    %v117 = vld [vmem:[#allocation2 + $0x38] sm:$0xff]
    %v118 = vld [vmem:[#allocation2 + $0x40] sm:$0xff]
    %v119 = vld [vmem:[#allocation2 + $0x48] sm:$0xff]
    %v120 = vld [vmem:[#allocation2 + $0x50] sm:$0xff]
    %v121 = vld [vmem:[#allocation2 + $0x58] sm:$0xff]
    %v122 = vld [vmem:[#allocation2 + $0x60] sm:$0xff]
    %v123 = vld [vmem:[#allocation2 + $0x68] sm:$0xff]
    %v124 = vld [vmem:[#allocation2 + $0x70] sm:$0xff]
    %v125 = vld [vmem:[#allocation2 + $0x78] sm:$0xff]
    %v126 = vld [vmem:[%s6] sm:$0x1]
    %v128 = vlaneseq
    %v129 = vshrl.u32 %v128, 7
    %v130 = vsub.s32 0, %v129
    %v131 = vrot.slane %v126, %v130
    %133 = vmatprep.subr.mxu0 0.0
    %134 = vmatpush1.msra.mxu0 %v110
    %135 = vmatprep.subr.mxu0 0.0
    %136 = vmatpush1.msra.mxu0 %v111
    %137 = vmatprep.subr.mxu0 0.0
    %138 = vmatpush1.msra.mxu0 %v112
    %139 = vmatprep.subr.mxu0 0.0
    %140 = vmatpush1.msra.mxu0 %v113
    %141 = vmatprep.subr.mxu0 0.0
    %142 = vmatpush1.msra.mxu0 %v114
    %143 = vmatprep.subr.mxu0 0.0
    %144 = vmatpush1.msra.mxu0 %v115
    %145 = vmatprep.subr.mxu0 0.0
    %146 = vmatpush1.msra.mxu0 %v116
    %147 = vmatprep.subr.mxu0 0.0
    %148 = vmatpush1.msra.mxu0 %v117
    %149 = vmatprep.subr.mxu0 0.0
    %150 = vmatpush1.msra.mxu0 %v118
    %151 = vmatprep.subr.mxu0 0.0
    %152 = vmatpush1.msra.mxu0 %v119
    %153 = vmatprep.subr.mxu0 0.0
    %154 = vmatpush1.msra.mxu0 %v120
    %155 = vmatprep.subr.mxu0 0.0
    %156 = vmatpush1.msra.mxu0 %v121
    %157 = vmatprep.subr.mxu0 0.0
    %158 = vmatpush1.msra.mxu0 %v122
    %159 = vmatprep.subr.mxu0 0.0
    %160 = vmatpush1.msra.mxu0 %v123
    %161 = vmatprep.subr.mxu0 0.0
    %162 = vmatpush1.msra.mxu0 %v124
    %163 = vmatprep.subr.mxu0 0.0
    %164 = vmatpush1.msra.mxu0 %v125
    %165 = vmatprep.subr.mxu0 0.0
    %166 = vmatpush1.msra.mxu0 0.0
    %167 = vmatprep.subr.mxu0 0.0
    %168 = vmatpush1.msra.mxu0 0.0
    %169 = vmatprep.subr.mxu0 0.0
    %170 = vmatpush1.msra.mxu0 0.0
    %171 = vmatprep.subr.mxu0 0.0
    %172 = vmatpush1.msra.mxu0 0.0
    %173 = vmatprep.subr.mxu0 0.0
    %174 = vmatpush1.msra.mxu0 0.0
    %175 = vmatprep.subr.mxu0 0.0
    %176 = vmatpush1.msra.mxu0 0.0
    %177 = vmatprep.subr.mxu0 0.0
    %178 = vmatpush1.msra.mxu0 0.0
    %179 = vmatprep.subr.mxu0 0.0
    %180 = vmatpush1.msra.mxu0 0.0
    %181 = vmatprep.subr.mxu0 0.0
    %182 = vmatpush1.msra.mxu0 0.0
    %183 = vmatprep.subr.mxu0 0.0
    %184 = vmatpush1.msra.mxu0 0.0
    %185 = vmatprep.subr.mxu0 0.0
    %186 = vmatpush1.msra.mxu0 0.0
    %187 = vmatprep.subr.mxu0 0.0
    %188 = vmatpush1.msra.mxu0 0.0
    %189 = vmatprep.subr.mxu0 0.0
    %190 = vmatpush1.msra.mxu0 0.0
    %191 = vmatprep.subr.mxu0 0.0
    %192 = vmatpush1.msra.mxu0 0.0
    %193 = vmatprep.subr.mxu0 0.0
    %194 = vmatpush1.msra.mxu0 0.0
    %195 = vmatprep.subr.mxu0 0.0
    %196 = vmatpush1.msra.mxu0 0.0
    %197 = vmatprep.mubr.f32.mxu0 0.0
    %198 = vmatmul.mubr.f32.gmra.mrb[0].mxu0 %v109
    %v199 = vpop.f32.mrb[0].mxu0
    %v200 = vadd.f32 %v131, %v199
    %v201 = vpop.f32.mrb[0].mxu0
    %202 = vdwg.mxu0
    %v203 = vlaneseq
    %v204 = vand.u32 %v203, 127
    %vm205 = vcmp.ge.s32.totalorder %v204, 16
    %vm206 = vcmp.lt.s32.totalorder %v204, 32
    %vm207 = vmand %vm205, %vm206
    %v208 = vmul.f32 %v200, 1.442695
    %v209 = vpow.pop %v208
    %v210 = vsel %vm207, %v209, %v200
    %211 = vst [vmem:[%s7] sm:$0xff] %v210
    // Predicated region
    $region34: #{decoder_forward.1} parent=1 // pred_check
      _
    $region35: #{decoder_forward.1} parent=1 // pred_check_branch
      %213 = sbr.rel (0) target = $region37
    $region36: #{decoder_forward.1} parent=1 // pred_region
      _
    $region37: #{decoder_forward.1} parent=1 // pred_fallthru
      _
    // Predicated region
    $region38: #{decoder_forward.1} parent=1 // pred_check
      _
    $region39: #{decoder_forward.1} parent=1 // pred_check_branch
      %215 = sbr.rel (0) target = $region41
    $region40: #{decoder_forward.1} parent=1 // pred_region
      _
    $region41: #{decoder_forward.1} parent=1 // pred_fallthru
      _
    %216 = vsyncpa [#allocation3], 1

</llo_original>
